<compile_context>
chip_gen: v5e
topology: v5e:2x2
jax: 0.10.0
libtpu: 0.0.40
codegen_flags: <defaults>
</compile_context>

<pallas_src>
import jax
import jax.numpy as jnp
from jax.experimental import pallas as pl
from jax.experimental.pallas import tpu as pltpu

_LANE = 128


def _round_up(x: int, m: int) -> int:
    return ((x + m - 1) // m) * m


def _sparse_mlp_kernel(
    x_ref,            # [B, IN]       bf16
    w1_ref, b1_ref,   # [IN, H]  bf16, [1, H]     f32   (mask pre-folded)
    w2_ref, b2_ref,   # [H, H]   bf16, [1, H]     f32   (banded mask pre-folded)
    w3_ref, b3_ref,   # [H, OUTP] bf16,[1, OUTP]  f32   (OUTP padded to 128 lanes)
    o_ref,            # [B, OUTP]     f32
):
    f32 = jnp.float32
    bf16 = jnp.bfloat16

    x = x_ref[...]                                                        # bf16
    h1 = jnp.dot(x, w1_ref[...], preferred_element_type=f32) + b1_ref[...]
    h2 = jnp.dot(h1.astype(bf16), w2_ref[...], preferred_element_type=f32) + b2_ref[...]
    h3 = jnp.dot(h2.astype(bf16), w3_ref[...], preferred_element_type=f32) + b3_ref[...]
    o_ref[...] = h3.astype(o_ref.dtype)


def prepare_params(raw):
    """Fold sparsity masks into the weights (W*M), cast to bf16, and pad the
    final layer's output dim to a multiple of 128 for lane-dense stores."""
    out_f = raw["w3"].shape[1]
    out_p = _round_up(out_f, _LANE)

    w1 = (raw["w1"] * raw["m1"]).astype(jnp.bfloat16)
    w2 = (raw["w2"] * raw["m2"]).astype(jnp.bfloat16)
    w3 = (raw["w3"] * raw["m3"]).astype(jnp.bfloat16)
    w3 = jnp.pad(w3, ((0, 0), (0, out_p - out_f)))
    b3 = jnp.pad(raw["b3"], ((0, 0), (0, out_p - out_f)))

    return dict(
        w1=w1, b1=raw["b1"],
        w2=w2, b2=raw["b2"],
        w3=w3, b3=b3,
        out_features=out_f,
    )


def sparse_nn_forward(x_nchw, folded):
    """SparseNNModel forward: flatten -> 3 masked-dense linears (masks pre-folded)."""
    B = x_nchw.shape[0]
    x_flat = x_nchw.reshape(B, -1).astype(jnp.bfloat16)   # nn.Flatten() + bf16 stream

    w1, b1 = folded["w1"], folded["b1"]
    w2, b2 = folded["w2"], folded["b2"]
    w3, b3 = folded["w3"], folded["b3"]
    out_f = folded["out_features"]

    in_f, hid = w1.shape
    out_p = w3.shape[1]
    assert x_flat.shape[1] == in_f

    full = lambda shape: pl.BlockSpec(shape, lambda: tuple(0 for _ in shape))

    out_padded = pl.pallas_call(
        _sparse_mlp_kernel,
        out_shape=jax.ShapeDtypeStruct((B, out_p), jnp.float32),
        in_specs=[
            full((B, in_f)),
            full((in_f, hid)), full((1, hid)),
            full((hid, hid)), full((1, hid)),
            full((hid, out_p)), full((1, out_p)),
        ],
        out_specs=full((B, out_p)),
        # Actual VMEM need (incl. double buffering) is < 1 MiB; 16 MiB is a safe
        # explicit ceiling on every generation (v7x has only 64 MiB total).
        compiler_params=pltpu.CompilerParams(vmem_limit_bytes=16 * 1024 * 1024),
    )(x_flat, w1, b1, w2, b2, w3, b3)

    return out_padded[:, :out_f]


def init_params(key, in_features, hidden_features, out_features):
    """Deterministic parameter init (mimics nn.Linear uniform init + sparsity masks)."""
    ks = jax.random.split(key, 8)

    def linear_init(kw, kb, fan_in, fan_out):
        bound = 1.0 / jnp.sqrt(fan_in)
        w = jax.random.uniform(kw, (fan_in, fan_out), jnp.float32, -bound, bound)
        b = jax.random.uniform(kb, (1, fan_out), jnp.float32, -bound, bound)
        return w, b

    w1, b1 = linear_init(ks[0], ks[1], in_features, hidden_features)
    w2, b2 = linear_init(ks[2], ks[3], hidden_features, hidden_features)
    w3, b3 = linear_init(ks[4], ks[5], hidden_features, out_features)

    # SimpleSparseLayer: random mask with 50% sparsity.
    m1 = (jax.random.uniform(ks[6], (in_features, hidden_features)) >= 0.5).astype(jnp.float32)
    m3 = (jax.random.uniform(ks[7], (hidden_features, out_features)) >= 0.5).astype(jnp.float32)

    # NearestNeighborSparseLayer: banded mask keeping nearest-neighbor connections,
    # band half-width chosen so density ~= 0.5.
    i = jnp.arange(hidden_features)[:, None]
    j = jnp.arange(hidden_features)[None, :]
    halfband = max(hidden_features // 4 - 1, 0)
    m2 = (jnp.abs(i - j) <= halfband).astype(jnp.float32)

    return dict(w1=w1, m1=m1, b1=b1, w2=w2, m2=m2, b2=b2, w3=w3, m3=m3, b3=b3)


def reference_forward(x_nchw, folded):
    """Pure-JAX reference that mirrors the kernel's numerics exactly
    (bf16 operands into the matmul, f32 accumulation, f32 bias add)."""
    f32 = jnp.float32
    bf16 = jnp.bfloat16
    x = x_nchw.reshape(x_nchw.shape[0], -1).astype(bf16)
    h1 = jnp.dot(x, folded["w1"], preferred_element_type=f32) + folded["b1"]
    h2 = jnp.dot(h1.astype(bf16), folded["w2"], preferred_element_type=f32) + folded["b2"]
    h3 = jnp.dot(h2.astype(bf16), folded["w3"], preferred_element_type=f32) + folded["b3"]
    return h3[:, : folded["out_features"]]


if __name__ == "__main__":
    # Small shapes consistent with the module: NCHW input, flattened to in_features.
    B, C, H, W = 2, 4, 16, 16
    in_features = C * H * W          # 1024
    hidden_features = 128
    out_features = 64

    key = jax.random.PRNGKey(0)
    kx, kp = jax.random.split(key)

    x = jax.random.normal(kx, (B, C, H, W), dtype=jnp.float32)
    raw_params = init_params(kp, in_features, hidden_features, out_features)
    folded_params = prepare_params(raw_params)   # masks folded once, bf16, lane-padded

    out = sparse_nn_forward(x, folded_params)
    out = jax.block_until_ready(out)

    ref = reference_forward(x, folded_params)
    assert out.shape == (B, out_features)
    assert jnp.allclose(out, ref, atol=1e-3, rtol=1e-3), "mismatch vs reference"

    print("KERNEL_OK")
</pallas_src>

<mosaic_0001>
module attributes {stable_mosaic.version = 11 : i64} {
  func.func @_sparse_mlp_kernel(%arg0: memref<2x1024xbf16, #tpu.memory_space<vmem>>, %arg1: memref<1024x128xbf16, #tpu.memory_space<vmem>>, %arg2: memref<1x128xf32, #tpu.memory_space<vmem>>, %arg3: memref<128x128xbf16, #tpu.memory_space<vmem>>, %arg4: memref<1x128xf32, #tpu.memory_space<vmem>>, %arg5: memref<128x128xbf16, #tpu.memory_space<vmem>>, %arg6: memref<1x128xf32, #tpu.memory_space<vmem>>, %arg7: memref<2x128xf32, #tpu.memory_space<vmem>>) attributes {dimension_semantics = [], scalar_prefetch = 0 : i64, scratch_operands = 0 : i64, tpu.core_type = #tpu.core_type<tc>} {
    %c0 = arith.constant 0 : index
    %c0_0 = arith.constant 0 : index
    %0 = vector.load %arg0[%c0, %c0_0] : memref<2x1024xbf16, #tpu.memory_space<vmem>>, vector<2x1024xbf16>
    %c0_1 = arith.constant 0 : index
    %c0_2 = arith.constant 0 : index
    %1 = vector.load %arg1[%c0_1, %c0_2] : memref<1024x128xbf16, #tpu.memory_space<vmem>>, vector<1024x128xbf16>
    %cst = arith.constant dense<0.000000e+00> : vector<2x128xf32>
    %2 = tpu.matmul %0, %1, %cst {dimension_numbers = #tpu.dot_dimension_numbers<[1], [0], [0], [1], [0, 0, 1, 1], [], []>} : vector<2x1024xbf16>, vector<1024x128xbf16>, vector<2x128xf32> -> vector<2x128xf32>
    %c0_3 = arith.constant 0 : index
    %c0_4 = arith.constant 0 : index
    %3 = vector.load %arg2[%c0_3, %c0_4] : memref<1x128xf32, #tpu.memory_space<vmem>>, vector<1x128xf32>
    %4 = vector.broadcast %3 : vector<1x128xf32> to vector<2x128xf32>
    %5 = arith.addf %2, %4 : vector<2x128xf32>
    %6 = arith.truncf %5 : vector<2x128xf32> to vector<2x128xbf16>
    %c0_5 = arith.constant 0 : index
    %c0_6 = arith.constant 0 : index
    %7 = vector.load %arg3[%c0_5, %c0_6] : memref<128x128xbf16, #tpu.memory_space<vmem>>, vector<128x128xbf16>
    %cst_7 = arith.constant dense<0.000000e+00> : vector<2x128xf32>
    %8 = tpu.matmul %6, %7, %cst_7 {dimension_numbers = #tpu.dot_dimension_numbers<[1], [0], [0], [1], [0, 0, 1, 1], [], []>} : vector<2x128xbf16>, vector<128x128xbf16>, vector<2x128xf32> -> vector<2x128xf32>
    %c0_8 = arith.constant 0 : index
    %c0_9 = arith.constant 0 : index
    %9 = vector.load %arg4[%c0_8, %c0_9] : memref<1x128xf32, #tpu.memory_space<vmem>>, vector<1x128xf32>
    %10 = vector.broadcast %9 : vector<1x128xf32> to vector<2x128xf32>
    %11 = arith.addf %8, %10 : vector<2x128xf32>
    %12 = arith.truncf %11 : vector<2x128xf32> to vector<2x128xbf16>
    %c0_10 = arith.constant 0 : index
    %c0_11 = arith.constant 0 : index
    %13 = vector.load %arg5[%c0_10, %c0_11] : memref<128x128xbf16, #tpu.memory_space<vmem>>, vector<128x128xbf16>
    %cst_12 = arith.constant dense<0.000000e+00> : vector<2x128xf32>
    %14 = tpu.matmul %12, %13, %cst_12 {dimension_numbers = #tpu.dot_dimension_numbers<[1], [0], [0], [1], [0, 0, 1, 1], [], []>} : vector<2x128xbf16>, vector<128x128xbf16>, vector<2x128xf32> -> vector<2x128xf32>
    %c0_13 = arith.constant 0 : index
    %c0_14 = arith.constant 0 : index
    %15 = vector.load %arg6[%c0_13, %c0_14] : memref<1x128xf32, #tpu.memory_space<vmem>>, vector<1x128xf32>
    %16 = vector.broadcast %15 : vector<1x128xf32> to vector<2x128xf32>
    %17 = arith.addf %14, %16 : vector<2x128xf32>
    %c0_15 = arith.constant 0 : index
    %c0_16 = arith.constant 0 : index
    %18 = vector.load %arg7[%c0_15, %c0_16] : memref<2x128xf32, #tpu.memory_space<vmem>>, vector<2x128xf32>
    tpu.vector_store %arg7[%c0_15, %c0_16], %17 {strides = array<i32>} : memref<2x128xf32, #tpu.memory_space<vmem>>, vector<2x128xf32>,
    return
  }
}

</mosaic_0001>

<llo_original>
// kernel: tpu_custom_call.1
$region0: #{tpu_custom_call.1}
  #allocation0 [shape = 'u32[]', space=smem, size = 0x4, offset = 0x4, fixed_abs, tag = 'smem constant byte address 0x4 - core index']
  #allocation1 [shape = 'u32[72,128]{1,0:T(1,128)}', space=vmem, size = 0x9000, scoped, tag = 'internal scratch']
  %s0 = inlined_call_operand.hbm [shape: bf16[2,1024], index: 0, kind: input, shape index: {}]
  %s1 = inlined_call_operand.hbm [shape: bf16[1024,128], index: 1, kind: input, shape index: {}]
  %s2 = inlined_call_operand.vmem [shape: f32[1,128], index: 2, kind: input, shape index: {}]
  %s3 = inlined_call_operand.hbm [shape: bf16[128,128], index: 3, kind: input, shape index: {}]
  %s4 = inlined_call_operand.vmem [shape: f32[1,128], index: 4, kind: input, shape index: {}]
  %s5 = inlined_call_operand.hbm [shape: bf16[128,128], index: 5, kind: input, shape index: {}]
  %s6 = inlined_call_operand.vmem [shape: f32[1,128], index: 6, kind: input, shape index: {}]
  %s7 = inlined_call_operand.hbm [shape: f32[2,128], index: 7, kind: output, shape index: {}]
  %s8 = sld [smem:[#allocation0]]
  $region54: #{tpu_custom_call.1} parent=0
    _
  %s10 = ssub.s32 1, %s8
  %s11 = scalar_select 0, %s10, %s8
  $region1: #{tpu_custom_call.1} parent=0
    #allocation2 [shape = 'u8[4096]{0}', space=vmem, size = 0x1000, scoped, tag = 'input window, operand 0, single buffered']
    #allocation3 [shape = 's32[1]{0}', space=sflag, size = 0x4, scoped, tag = 'scoped memory for tpu_custom_call.1']
    #allocation4 [shape = 's32[1]{0}', space=sflag, size = 0x4, scoped, tag = 'scoped memory for tpu_custom_call.1']
    #allocation5 [shape = 'u8[262144]{0}', space=vmem, size = 0x40000, scoped, tag = 'input window, operand 1, single buffered']
    #allocation6 [shape = 's32[1]{0}', space=sflag, size = 0x4, scoped, tag = 'scoped memory for tpu_custom_call.1']
    #allocation7 [shape = 'u8[32768]{0}', space=vmem, size = 0x8000, scoped, tag = 'input window, operand 3, single buffered']
    #allocation8 [shape = 'u8[32768]{0}', space=vmem, size = 0x8000, scoped, tag = 'input window, operand 5, single buffered']
    #allocation9 [shape = 's32[1]{0}', space=sflag, size = 0x4, scoped, tag = 'scoped memory for tpu_custom_call.1']
    #allocation10 [shape = 'u8[1024]{0}', space=vmem, size = 0x400, scoped, tag = 'output window, operand 0, single buffered']
    %12 = vsyncpa [#allocation3], 0
    %13 = vsyncpa [#allocation6], 0
    %14 = vsyncpa [#allocation9], 0
    %15 = vsyncpa [#allocation4], 0
    // Predicated region
    $region2: #{tpu_custom_call.1} parent=1 // pred_check
      _
    $region3: #{tpu_custom_call.1} parent=1 // pred_check_branch
      %17 = sbr.rel (0) target = $region5
    $region4: #{tpu_custom_call.1} parent=1 // pred_region
      %19 = vsyncadd [#allocation3], 0
      %s21 = sshll.u32 %s0, 4
      %s22 = int_to_ptr.hbm [resolvable:$true] %s21
      %s23 = sshll.u32 [#allocation2], 4
      %s24 = int_to_ptr.vmem [resolvable:$true] %s23
      %26 = dma.hbm_to_vmem [thread:$0]  %s22, 128, %s24, [#allocation3]
    $region5: #{tpu_custom_call.1} parent=1 // pred_fallthru
      _
    // Predicated region
    $region6: #{tpu_custom_call.1} parent=1 // pred_check
      _
    $region7: #{tpu_custom_call.1} parent=1 // pred_check_branch
      %28 = sbr.rel (0) target = $region9
    $region8: #{tpu_custom_call.1} parent=1 // pred_region
      %30 = vsyncadd [#allocation6], 0
      %s31 = sshll.u32 %s1, 4
      %s32 = int_to_ptr.hbm [resolvable:$true] %s31
      %s33 = sshll.u32 [#allocation5], 4
      %s34 = int_to_ptr.vmem [resolvable:$true] %s33
      %39 = dma.hbm_to_vmem [thread:$0]  %s32, 8192, %s34, [#allocation6], 64, 64, 4
    $region9: #{tpu_custom_call.1} parent=1 // pred_fallthru
      _
    // Predicated region
    $region10: #{tpu_custom_call.1} parent=1 // pred_check
      _
    $region11: #{tpu_custom_call.1} parent=1 // pred_check_branch
      %41 = sbr.rel (0) target = $region13
    $region12: #{tpu_custom_call.1} parent=1 // pred_region
      _
    $region13: #{tpu_custom_call.1} parent=1 // pred_fallthru
      _
    // Predicated region
    $region14: #{tpu_custom_call.1} parent=1 // pred_check
      _
    $region15: #{tpu_custom_call.1} parent=1 // pred_check_branch
      %43 = sbr.rel (0) target = $region17
    $region16: #{tpu_custom_call.1} parent=1 // pred_region
      %45 = vsyncadd [#allocation6], 0
      %s46 = sshll.u32 %s3, 4
      %s47 = int_to_ptr.hbm [resolvable:$true] %s46
      %s48 = sshll.u32 [#allocation7], 4
      %s49 = int_to_ptr.vmem [resolvable:$true] %s48
      %54 = dma.hbm_to_vmem [thread:$0]  %s47, 1024, %s49, [#allocation6], 64, 64, 4
    $region17: #{tpu_custom_call.1} parent=1 // pred_fallthru
      _
    // Predicated region
    $region18: #{tpu_custom_call.1} parent=1 // pred_check
      _
    $region19: #{tpu_custom_call.1} parent=1 // pred_check_branch
      %56 = sbr.rel (0) target = $region21
    $region20: #{tpu_custom_call.1} parent=1 // pred_region
      _
    $region21: #{tpu_custom_call.1} parent=1 // pred_fallthru
      _
    // Predicated region
    $region22: #{tpu_custom_call.1} parent=1 // pred_check
      _
    $region23: #{tpu_custom_call.1} parent=1 // pred_check_branch
      %58 = sbr.rel (0) target = $region25
    $region24: #{tpu_custom_call.1} parent=1 // pred_region
      %60 = vsyncadd [#allocation9], 0
      %s61 = sshll.u32 %s5, 4
      %s62 = int_to_ptr.hbm [resolvable:$true] %s61
      %s63 = sshll.u32 [#allocation8], 4
      %s64 = int_to_ptr.vmem [resolvable:$true] %s63
      %69 = dma.hbm_to_vmem [thread:$0]  %s62, 1024, %s64, [#allocation9], 64, 64, 4
    $region25: #{tpu_custom_call.1} parent=1 // pred_fallthru
      _
    // Predicated region
    $region26: #{tpu_custom_call.1} parent=1 // pred_check
      _
    $region27: #{tpu_custom_call.1} parent=1 // pred_check_branch
      %71 = sbr.rel (0) target = $region29
    $region28: #{tpu_custom_call.1} parent=1 // pred_region
      _
    $region29: #{tpu_custom_call.1} parent=1 // pred_fallthru
      _
    // Predicated region
    $region30: #{tpu_custom_call.1} parent=1 // pred_check
      _
    $region31: #{tpu_custom_call.1} parent=1 // pred_check_branch
      %73 = sbr.rel (0) target = $region33
    $region32: #{tpu_custom_call.1} parent=1 // pred_region
      %75 = dma.done [#allocation3], 128
    $region33: #{tpu_custom_call.1} parent=1 // pred_fallthru
      _
    // Predicated region
    $region34: #{tpu_custom_call.1} parent=1 // pred_check
      _
    $region35: #{tpu_custom_call.1} parent=1 // pred_check_branch
      %77 = sbr.rel (0) target = $region37
    $region36: #{tpu_custom_call.1} parent=1 // pred_region
      %79 = dma.done [#allocation6], 8192
    $region37: #{tpu_custom_call.1} parent=1 // pred_fallthru
      _
    // Predicated region
    $region38: #{tpu_custom_call.1} parent=1 // pred_check
      _
    $region39: #{tpu_custom_call.1} parent=1 // pred_check_branch
      %81 = sbr.rel (0) target = $region41
    $region40: #{tpu_custom_call.1} parent=1 // pred_region
      %83 = dma.done [#allocation6], 1024
    $region41: #{tpu_custom_call.1} parent=1 // pred_fallthru
      _
    // Predicated region
    $region42: #{tpu_custom_call.1} parent=1 // pred_check
      _
    $region43: #{tpu_custom_call.1} parent=1 // pred_check_branch
      %85 = sbr.rel (0) target = $region45
    $region44: #{tpu_custom_call.1} parent=1 // pred_region
      %87 = dma.done [#allocation9], 1024
    $region45: #{tpu_custom_call.1} parent=1 // pred_fallthru
      _
    %v88 = vld [vmem:[#allocation2] sm:$0xff]
    %v89 = vld [vmem:[#allocation5] sm:$0xf]
    %v90 = vld [vmem:[#allocation5 + $0x4] sm:$0xf]
    %v91 = vld [vmem:[#allocation5 + $0x8] sm:$0xf]
    %v92 = vld [vmem:[#allocation5 + $0xc] sm:$0xf]
    %v93 = vld [vmem:[#allocation5 + $0x10] sm:$0xf]
    %v94 = vld [vmem:[#allocation5 + $0x14] sm:$0xf]
    %v95 = vld [vmem:[#allocation5 + $0x18] sm:$0xf]
    %v96 = vld [vmem:[#allocation5 + $0x1c] sm:$0xf]
    %v97 = vld [vmem:[#allocation5 + $0x20] sm:$0xf]
    %v98 = vld [vmem:[#allocation5 + $0x24] sm:$0xf]
    %v99 = vld [vmem:[#allocation5 + $0x28] sm:$0xf]
    %v100 = vld [vmem:[#allocation5 + $0x2c] sm:$0xf]
    %v101 = vld [vmem:[#allocation5 + $0x30] sm:$0xf]
    %v102 = vld [vmem:[#allocation5 + $0x34] sm:$0xf]
    %v103 = vld [vmem:[#allocation5 + $0x38] sm:$0xf]
    %v104 = vld [vmem:[#allocation5 + $0x3c] sm:$0xf]
    %v105 = vld [vmem:[#allocation5 + $0x40] sm:$0xf]
    %v106 = vld [vmem:[#allocation5 + $0x44] sm:$0xf]
    %v107 = vld [vmem:[#allocation5 + $0x48] sm:$0xf]
    %v108 = vld [vmem:[#allocation5 + $0x4c] sm:$0xf]
    %v109 = vld [vmem:[#allocation5 + $0x50] sm:$0xf]
    %v110 = vld [vmem:[#allocation5 + $0x54] sm:$0xf]
    %v111 = vld [vmem:[#allocation5 + $0x58] sm:$0xf]
    %v112 = vld [vmem:[#allocation5 + $0x5c] sm:$0xf]
    %v113 = vld [vmem:[#allocation5 + $0x60] sm:$0xf]
    %v114 = vld [vmem:[#allocation5 + $0x64] sm:$0xf]
    %v115 = vld [vmem:[#allocation5 + $0x68] sm:$0xf]
    %v116 = vld [vmem:[#allocation5 + $0x6c] sm:$0xf]
    %v117 = vld [vmem:[#allocation5 + $0x70] sm:$0xf]
    %v118 = vld [vmem:[#allocation5 + $0x74] sm:$0xf]
    %v119 = vld [vmem:[#allocation5 + $0x78] sm:$0xf]
    %v120 = vld [vmem:[#allocation5 + $0x7c] sm:$0xf]
    %v121 = vld [vmem:[#allocation5 + $0x80] sm:$0xf]
    %v122 = vld [vmem:[#allocation5 + $0x84] sm:$0xf]
    %v123 = vld [vmem:[#allocation5 + $0x88] sm:$0xf]
    %v124 = vld [vmem:[#allocation5 + $0x8c] sm:$0xf]
    %v125 = vld [vmem:[#allocation5 + $0x90] sm:$0xf]
    %v126 = vld [vmem:[#allocation5 + $0x94] sm:$0xf]
    %v127 = vld [vmem:[#allocation5 + $0x98] sm:$0xf]
    %v128 = vld [vmem:[#allocation5 + $0x9c] sm:$0xf]
    %v129 = vld [vmem:[#allocation5 + $0xa0] sm:$0xf]
    %v130 = vld [vmem:[#allocation5 + $0xa4] sm:$0xf]
    %v131 = vld [vmem:[#allocation5 + $0xa8] sm:$0xf]
    %v132 = vld [vmem:[#allocation5 + $0xac] sm:$0xf]
    %v133 = vld [vmem:[#allocation5 + $0xb0] sm:$0xf]
    %v134 = vld [vmem:[#allocation5 + $0xb4] sm:$0xf]
    %v135 = vld [vmem:[#allocation5 + $0xb8] sm:$0xf]
    %v136 = vld [vmem:[#allocation5 + $0xbc] sm:$0xf]
    %v137 = vld [vmem:[#allocation5 + $0xc0] sm:$0xf]
    %v138 = vld [vmem:[#allocation5 + $0xc4] sm:$0xf]
    %v139 = vld [vmem:[#allocation5 + $0xc8] sm:$0xf]
    %v140 = vld [vmem:[#allocation5 + $0xcc] sm:$0xf]
    %v141 = vld [vmem:[#allocation5 + $0xd0] sm:$0xf]
    %v142 = vld [vmem:[#allocation5 + $0xd4] sm:$0xf]
    %v143 = vld [vmem:[#allocation5 + $0xd8] sm:$0xf]
    %v144 = vld [vmem:[#allocation5 + $0xdc] sm:$0xf]
    %v145 = vld [vmem:[#allocation5 + $0xe0] sm:$0xf]
    %v146 = vld [vmem:[#allocation5 + $0xe4] sm:$0xf]
    %v147 = vld [vmem:[#allocation5 + $0xe8] sm:$0xf]
    %v148 = vld [vmem:[#allocation5 + $0xec] sm:$0xf]
    %v149 = vld [vmem:[#allocation5 + $0xf0] sm:$0xf]
    %v150 = vld [vmem:[#allocation5 + $0xf4] sm:$0xf]
    %v151 = vld [vmem:[#allocation5 + $0xf8] sm:$0xf]
    %v152 = vld [vmem:[#allocation5 + $0xfc] sm:$0xf]
    %v153 = vld [vmem:[#allocation5 + $0x100] sm:$0xf]
    %v154 = vld [vmem:[#allocation5 + $0x104] sm:$0xf]
    %v155 = vld [vmem:[#allocation5 + $0x108] sm:$0xf]
    %v156 = vld [vmem:[#allocation5 + $0x10c] sm:$0xf]
    %v157 = vld [vmem:[#allocation5 + $0x110] sm:$0xf]
    %v158 = vld [vmem:[#allocation5 + $0x114] sm:$0xf]
    %v159 = vld [vmem:[#allocation5 + $0x118] sm:$0xf]
    %v160 = vld [vmem:[#allocation5 + $0x11c] sm:$0xf]
    %v161 = vld [vmem:[#allocation5 + $0x120] sm:$0xf]
    %v162 = vld [vmem:[#allocation5 + $0x124] sm:$0xf]
    %v163 = vld [vmem:[#allocation5 + $0x128] sm:$0xf]
    %v164 = vld [vmem:[#allocation5 + $0x12c] sm:$0xf]
    %v165 = vld [vmem:[#allocation5 + $0x130] sm:$0xf]
    %v166 = vld [vmem:[#allocation5 + $0x134] sm:$0xf]
    %v167 = vld [vmem:[#allocation5 + $0x138] sm:$0xf]
    %v168 = vld [vmem:[#allocation5 + $0x13c] sm:$0xf]
    %v169 = vld [vmem:[#allocation5 + $0x140] sm:$0xf]
    %v170 = vld [vmem:[#allocation5 + $0x144] sm:$0xf]
    %v171 = vld [vmem:[#allocation5 + $0x148] sm:$0xf]
    %v172 = vld [vmem:[#allocation5 + $0x14c] sm:$0xf]
    %v173 = vld [vmem:[#allocation5 + $0x150] sm:$0xf]
    %v174 = vld [vmem:[#allocation5 + $0x154] sm:$0xf]
    %v175 = vld [vmem:[#allocation5 + $0x158] sm:$0xf]
    %v176 = vld [vmem:[#allocation5 + $0x15c] sm:$0xf]
    %v177 = vld [vmem:[#allocation5 + $0x160] sm:$0xf]
    %v178 = vld [vmem:[#allocation5 + $0x164] sm:$0xf]
    %v179 = vld [vmem:[#allocation5 + $0x168] sm:$0xf]
    %v180 = vld [vmem:[#allocation5 + $0x16c] sm:$0xf]
    %v181 = vld [vmem:[#allocation5 + $0x170] sm:$0xf]
    %v182 = vld [vmem:[#allocation5 + $0x174] sm:$0xf]
    %v183 = vld [vmem:[#allocation5 + $0x178] sm:$0xf]
    %v184 = vld [vmem:[#allocation5 + $0x17c] sm:$0xf]
    %v185 = vld [vmem:[#allocation5 + $0x180] sm:$0xf]
    %v186 = vld [vmem:[#allocation5 + $0x184] sm:$0xf]
    %v187 = vld [vmem:[#allocation5 + $0x188] sm:$0xf]
    %v188 = vld [vmem:[#allocation5 + $0x18c] sm:$0xf]
    %v189 = vld [vmem:[#allocation5 + $0x190] sm:$0xf]
    %v190 = vld [vmem:[#allocation5 + $0x194] sm:$0xf]
    %v191 = vld [vmem:[#allocation5 + $0x198] sm:$0xf]
    %v192 = vld [vmem:[#allocation5 + $0x19c] sm:$0xf]
    %v193 = vld [vmem:[#allocation5 + $0x1a0] sm:$0xf]
    %v194 = vld [vmem:[#allocation5 + $0x1a4] sm:$0xf]
    %v195 = vld [vmem:[#allocation5 + $0x1a8] sm:$0xf]
    %v196 = vld [vmem:[#allocation5 + $0x1ac] sm:$0xf]
    %v197 = vld [vmem:[#allocation5 + $0x1b0] sm:$0xf]
    %v198 = vld [vmem:[#allocation5 + $0x1b4] sm:$0xf]
    %v199 = vld [vmem:[#allocation5 + $0x1b8] sm:$0xf]
    %v200 = vld [vmem:[#allocation5 + $0x1bc] sm:$0xf]
    %v201 = vld [vmem:[#allocation5 + $0x1c0] sm:$0xf]
    %v202 = vld [vmem:[#allocation5 + $0x1c4] sm:$0xf]
    %v203 = vld [vmem:[#allocation5 + $0x1c8] sm:$0xf]
    %v204 = vld [vmem:[#allocation5 + $0x1cc] sm:$0xf]
    %v205 = vld [vmem:[#allocation5 + $0x1d0] sm:$0xf]
    %v206 = vld [vmem:[#allocation5 + $0x1d4] sm:$0xf]
    %v207 = vld [vmem:[#allocation5 + $0x1d8] sm:$0xf]
    %v208 = vld [vmem:[#allocation5 + $0x1dc] sm:$0xf]
    %v209 = vld [vmem:[#allocation5 + $0x1e0] sm:$0xf]
    %v210 = vld [vmem:[#allocation5 + $0x1e4] sm:$0xf]
    %v211 = vld [vmem:[#allocation5 + $0x1e8] sm:$0xf]
    %v212 = vld [vmem:[#allocation5 + $0x1ec] sm:$0xf]
    %v213 = vld [vmem:[#allocation5 + $0x1f0] sm:$0xf]
    %v214 = vld [vmem:[#allocation5 + $0x1f4] sm:$0xf]
    %v215 = vld [vmem:[#allocation5 + $0x1f8] sm:$0xf]
    %v216 = vld [vmem:[#allocation5 + $0x1fc] sm:$0xf]
    %v217 = vld [vmem:[%s2] sm:$0x1]
    %v219 = vperm.slane %v217, 0
    %222 = vst [vmem:[#allocation1] ss:$9 sm:$0xff] %v88
    %v223 = vld [vmem:[#allocation1] sm:$0xff]
    %v224 = vld [vmem:[#allocation1 + $0x9] sm:$0xff]
    %v225 = vld [vmem:[#allocation1 + $0x12] sm:$0xff]
    %v226 = vld [vmem:[#allocation1 + $0x1b] sm:$0xff]
    %v227 = vld [vmem:[#allocation1 + $0x24] sm:$0xff]
    %v228 = vld [vmem:[#allocation1 + $0x2d] sm:$0xff]
    %v229 = vld [vmem:[#allocation1 + $0x36] sm:$0xff]
    %v230 = vld [vmem:[#allocation1 + $0x3f] sm:$0xff]
    %v367 = vunpack.c.l.b16 %v89
    %v368 = vunpack.c.l.b16 %v90
    %v369 = vunpack.c.l.b16 %v91
    %v370 = vunpack.c.l.b16 %v92
    %v371 = vunpack.c.l.b16 %v93
    %v372 = vunpack.c.l.b16 %v94
    %v373 = vunpack.c.l.b16 %v95
    %v374 = vunpack.c.l.b16 %v96
    %v375 = vunpack.c.l.b16 %v97
    %v376 = vunpack.c.l.b16 %v98
    %v377 = vunpack.c.l.b16 %v99
    %v378 = vunpack.c.l.b16 %v100
    %v379 = vunpack.c.l.b16 %v101
    %v380 = vunpack.c.l.b16 %v102
    %v381 = vunpack.c.l.b16 %v103
    %v382 = vunpack.c.l.b16 %v104
    %v383 = vunpack.c.l.b16 %v105
    %v384 = vunpack.c.l.b16 %v106
    %v385 = vunpack.c.l.b16 %v107
    %v386 = vunpack.c.l.b16 %v108
    %v387 = vunpack.c.l.b16 %v109
    %v388 = vunpack.c.l.b16 %v110
    %v389 = vunpack.c.l.b16 %v111
    %v390 = vunpack.c.l.b16 %v112
    %v391 = vunpack.c.l.b16 %v113
    %v392 = vunpack.c.l.b16 %v114
    %v393 = vunpack.c.l.b16 %v115
    %v394 = vunpack.c.l.b16 %v116
    %v395 = vunpack.c.l.b16 %v117
    %v396 = vunpack.c.l.b16 %v118
    %v397 = vunpack.c.l.b16 %v119
    %v398 = vunpack.c.l.b16 %v120
    %v399 = vunpack.c.l.b16 %v121
    %v400 = vunpack.c.l.b16 %v122
    %v401 = vunpack.c.l.b16 %v123
    %v402 = vunpack.c.l.b16 %v124
    %v403 = vunpack.c.l.b16 %v125
    %v404 = vunpack.c.l.b16 %v126
    %v405 = vunpack.c.l.b16 %v127
    %v406 = vunpack.c.l.b16 %v128
    %v407 = vunpack.c.l.b16 %v129
    %v408 = vunpack.c.l.b16 %v130
    %v409 = vunpack.c.l.b16 %v131
    %v410 = vunpack.c.l.b16 %v132
    %v411 = vunpack.c.l.b16 %v133
    %v412 = vunpack.c.l.b16 %v134
    %v413 = vunpack.c.l.b16 %v135
    %v414 = vunpack.c.l.b16 %v136
    %v415 = vunpack.c.l.b16 %v137
    %v416 = vunpack.c.l.b16 %v138
    %v417 = vunpack.c.l.b16 %v139
    %v418 = vunpack.c.l.b16 %v140
    %v419 = vunpack.c.l.b16 %v141
    %v420 = vunpack.c.l.b16 %v142
    %v421 = vunpack.c.l.b16 %v143
    %v422 = vunpack.c.l.b16 %v144
    %v423 = vunpack.c.l.b16 %v145
    %v424 = vunpack.c.l.b16 %v146
    %v425 = vunpack.c.l.b16 %v147
    %v426 = vunpack.c.l.b16 %v148
    %v427 = vunpack.c.l.b16 %v149
    %v428 = vunpack.c.l.b16 %v150
    %v429 = vunpack.c.l.b16 %v151
    %v430 = vunpack.c.l.b16 %v152
    %v431 = vunpack.c.l.b16 %v153
    %v432 = vunpack.c.l.b16 %v154
    %v433 = vunpack.c.l.b16 %v155
    %v434 = vunpack.c.l.b16 %v156
    %v435 = vunpack.c.l.b16 %v157
    %v436 = vunpack.c.l.b16 %v158
    %v437 = vunpack.c.l.b16 %v159
    %v438 = vunpack.c.l.b16 %v160
    %v439 = vunpack.c.l.b16 %v161
    %v440 = vunpack.c.l.b16 %v162
    %v441 = vunpack.c.l.b16 %v163
    %v442 = vunpack.c.l.b16 %v164
    %v443 = vunpack.c.l.b16 %v165
    %v444 = vunpack.c.l.b16 %v166
    %v445 = vunpack.c.l.b16 %v167
    %v446 = vunpack.c.l.b16 %v168
    %v447 = vunpack.c.l.b16 %v169
    %v448 = vunpack.c.l.b16 %v170
    %v449 = vunpack.c.l.b16 %v171
    %v450 = vunpack.c.l.b16 %v172
    %v451 = vunpack.c.l.b16 %v173
    %v452 = vunpack.c.l.b16 %v174
    %v453 = vunpack.c.l.b16 %v175
    %v454 = vunpack.c.l.b16 %v176
    %v455 = vunpack.c.l.b16 %v177
    %v456 = vunpack.c.l.b16 %v178
    %v457 = vunpack.c.l.b16 %v179
    %v458 = vunpack.c.l.b16 %v180
    %v459 = vunpack.c.l.b16 %v181
    %v460 = vunpack.c.l.b16 %v182
    %v461 = vunpack.c.l.b16 %v183
    %v462 = vunpack.c.l.b16 %v184
    %v463 = vunpack.c.l.b16 %v185
    %v464 = vunpack.c.l.b16 %v186
    %v465 = vunpack.c.l.b16 %v187
    %v466 = vunpack.c.l.b16 %v188
    %v467 = vunpack.c.l.b16 %v189
    %v468 = vunpack.c.l.b16 %v190
    %v469 = vunpack.c.l.b16 %v191
    %v470 = vunpack.c.l.b16 %v192
    %v471 = vunpack.c.l.b16 %v193
    %v472 = vunpack.c.l.b16 %v194
    %v473 = vunpack.c.l.b16 %v195
    %v474 = vunpack.c.l.b16 %v196
    %v475 = vunpack.c.l.b16 %v197
    %v476 = vunpack.c.l.b16 %v198
    %v477 = vunpack.c.l.b16 %v199
    %v478 = vunpack.c.l.b16 %v200
    %v479 = vunpack.c.l.b16 %v201
    %v480 = vunpack.c.l.b16 %v202
    %v481 = vunpack.c.l.b16 %v203
    %v482 = vunpack.c.l.b16 %v204
    %v483 = vunpack.c.l.b16 %v205
    %v484 = vunpack.c.l.b16 %v206
    %v485 = vunpack.c.l.b16 %v207
    %v486 = vunpack.c.l.b16 %v208
    %v487 = vunpack.c.l.b16 %v209
    %v488 = vunpack.c.l.b16 %v210
    %v489 = vunpack.c.l.b16 %v211
    %v490 = vunpack.c.l.b16 %v212
    %v491 = vunpack.c.l.b16 %v213
    %v492 = vunpack.c.l.b16 %v214
    %v493 = vunpack.c.l.b16 %v215
    %v494 = vunpack.c.l.b16 %v216
    %v495 = vpack.c.b16 %v368, %v367
    %v496 = vpack.c.b16 %v370, %v369
    %v497 = vpack.c.b16 %v372, %v371
    %v498 = vpack.c.b16 %v374, %v373
    %v499 = vpack.c.b16 %v376, %v375
    %v500 = vpack.c.b16 %v378, %v377
    %v501 = vpack.c.b16 %v380, %v379
    %v502 = vpack.c.b16 %v382, %v381
    %v503 = vpack.c.b16 %v384, %v383
    %v504 = vpack.c.b16 %v386, %v385
    %v505 = vpack.c.b16 %v388, %v387
    %v506 = vpack.c.b16 %v390, %v389
    %v507 = vpack.c.b16 %v392, %v391
    %v508 = vpack.c.b16 %v394, %v393
    %v509 = vpack.c.b16 %v396, %v395
    %v510 = vpack.c.b16 %v398, %v397
    %v511 = vpack.c.b16 %v400, %v399
    %v512 = vpack.c.b16 %v402, %v401
    %v513 = vpack.c.b16 %v404, %v403
    %v514 = vpack.c.b16 %v406, %v405
    %v515 = vpack.c.b16 %v408, %v407
    %v516 = vpack.c.b16 %v410, %v409
    %v517 = vpack.c.b16 %v412, %v411
    %v518 = vpack.c.b16 %v414, %v413
    %v519 = vpack.c.b16 %v416, %v415
    %v520 = vpack.c.b16 %v418, %v417
    %v521 = vpack.c.b16 %v420, %v419
    %v522 = vpack.c.b16 %v422, %v421
    %v523 = vpack.c.b16 %v424, %v423
    %v524 = vpack.c.b16 %v426, %v425
    %v525 = vpack.c.b16 %v428, %v427
    %v526 = vpack.c.b16 %v430, %v429
    %v527 = vpack.c.b16 %v432, %v431
    %v528 = vpack.c.b16 %v434, %v433
    %v529 = vpack.c.b16 %v436, %v435
    %v530 = vpack.c.b16 %v438, %v437
    %v531 = vpack.c.b16 %v440, %v439
    %v532 = vpack.c.b16 %v442, %v441
    %v533 = vpack.c.b16 %v444, %v443
    %v534 = vpack.c.b16 %v446, %v445
    %v535 = vpack.c.b16 %v448, %v447
    %v536 = vpack.c.b16 %v450, %v449
    %v537 = vpack.c.b16 %v452, %v451
    %v538 = vpack.c.b16 %v454, %v453
    %v539 = vpack.c.b16 %v456, %v455
    %v540 = vpack.c.b16 %v458, %v457
    %v541 = vpack.c.b16 %v460, %v459
    %v542 = vpack.c.b16 %v462, %v461
    %v543 = vpack.c.b16 %v464, %v463
    %v544 = vpack.c.b16 %v466, %v465
    %v545 = vpack.c.b16 %v468, %v467
    %v546 = vpack.c.b16 %v470, %v469
    %v547 = vpack.c.b16 %v472, %v471
    %v548 = vpack.c.b16 %v474, %v473
    %v549 = vpack.c.b16 %v476, %v475
    %v550 = vpack.c.b16 %v478, %v477
    %v551 = vpack.c.b16 %v480, %v479
    %v552 = vpack.c.b16 %v482, %v481
    %v553 = vpack.c.b16 %v484, %v483
    %v554 = vpack.c.b16 %v486, %v485
    %v555 = vpack.c.b16 %v488, %v487
    %v556 = vpack.c.b16 %v490, %v489
    %v557 = vpack.c.b16 %v492, %v491
    %v558 = vpack.c.b16 %v494, %v493
    %623 = vmatpush.bf16.msra.mxu0 %v502
    %624 = vmatpush.bf16.msra.mxu0 %v501
    %625 = vmatpush.bf16.msra.mxu0 %v500
    %626 = vmatpush.bf16.msra.mxu0 %v499
    %627 = vmatpush.bf16.msra.mxu0 %v498
    %628 = vmatpush.bf16.msra.mxu0 %v497
    %629 = vmatpush.bf16.msra.mxu0 %v496
    %630 = vmatpush.bf16.msra.mxu0 %v495
    %631 = vmatmul.bf16.gmra.mxu0 %v223
    %v632 = vpop.f32.mrf.mxu0
    %v633 = vadd.f32 %v219, %v632
    %v634 = vpop.f32.mrf.mxu0
    %635 = vdwg.mxu0
    %636 = vmatpush.bf16.msra.mxu0 %v510
    %637 = vmatpush.bf16.msra.mxu0 %v509
    %638 = vmatpush.bf16.msra.mxu0 %v508
    %639 = vmatpush.bf16.msra.mxu0 %v507
    %640 = vmatpush.bf16.msra.mxu0 %v506
    %641 = vmatpush.bf16.msra.mxu0 %v505
    %642 = vmatpush.bf16.msra.mxu0 %v504
    %643 = vmatpush.bf16.msra.mxu0 %v503
    %644 = vmatmul.bf16.gmra.mxu0 %v224
    %v645 = vpop.f32.mrf.mxu0
    %v646 = vadd.f32 %v633, %v645
    %v647 = vpop.f32.mrf.mxu0
    %648 = vdwg.mxu0
    %649 = vmatpush.bf16.msra.mxu0 %v518
    %650 = vmatpush.bf16.msra.mxu0 %v517
    %651 = vmatpush.bf16.msra.mxu0 %v516
    %652 = vmatpush.bf16.msra.mxu0 %v515
    %653 = vmatpush.bf16.msra.mxu0 %v514
    %654 = vmatpush.bf16.msra.mxu0 %v513
    %655 = vmatpush.bf16.msra.mxu0 %v512
    %656 = vmatpush.bf16.msra.mxu0 %v511
    %657 = vmatmul.bf16.gmra.mxu0 %v225
    %v658 = vpop.f32.mrf.mxu0
    %v659 = vadd.f32 %v646, %v658
    %v660 = vpop.f32.mrf.mxu0
    %661 = vdwg.mxu0
    %662 = vmatpush.bf16.msra.mxu0 %v526
    %663 = vmatpush.bf16.msra.mxu0 %v525
    %664 = vmatpush.bf16.msra.mxu0 %v524
    %665 = vmatpush.bf16.msra.mxu0 %v523
    %666 = vmatpush.bf16.msra.mxu0 %v522
    %667 = vmatpush.bf16.msra.mxu0 %v521
    %668 = vmatpush.bf16.msra.mxu0 %v520
    %669 = vmatpush.bf16.msra.mxu0 %v519
    %670 = vmatmul.bf16.gmra.mxu0 %v226
    %v671 = vpop.f32.mrf.mxu0
    %v672 = vadd.f32 %v659, %v671
    %v673 = vpop.f32.mrf.mxu0
    %674 = vdwg.mxu0
    %675 = vmatpush.bf16.msra.mxu0 %v534
    %676 = vmatpush.bf16.msra.mxu0 %v533
    %677 = vmatpush.bf16.msra.mxu0 %v532
    %678 = vmatpush.bf16.msra.mxu0 %v531
    %679 = vmatpush.bf16.msra.mxu0 %v530
    %680 = vmatpush.bf16.msra.mxu0 %v529
    %681 = vmatpush.bf16.msra.mxu0 %v528
    %682 = vmatpush.bf16.msra.mxu0 %v527
    %683 = vmatmul.bf16.gmra.mxu0 %v227
    %v684 = vpop.f32.mrf.mxu0
    %v685 = vadd.f32 %v672, %v684
    %v686 = vpop.f32.mrf.mxu0
    %687 = vdwg.mxu0
    %688 = vmatpush.bf16.msra.mxu0 %v542
    %689 = vmatpush.bf16.msra.mxu0 %v541
    %690 = vmatpush.bf16.msra.mxu0 %v540
    %691 = vmatpush.bf16.msra.mxu0 %v539
    %692 = vmatpush.bf16.msra.mxu0 %v538
    %693 = vmatpush.bf16.msra.mxu0 %v537
    %694 = vmatpush.bf16.msra.mxu0 %v536
    %695 = vmatpush.bf16.msra.mxu0 %v535
    %696 = vmatmul.bf16.gmra.mxu0 %v228
    %v697 = vpop.f32.mrf.mxu0
    %v698 = vadd.f32 %v685, %v697
    %v699 = vpop.f32.mrf.mxu0
    %700 = vdwg.mxu0
    %701 = vmatpush.bf16.msra.mxu0 %v550
    %702 = vmatpush.bf16.msra.mxu0 %v549
    %703 = vmatpush.bf16.msra.mxu0 %v548
    %704 = vmatpush.bf16.msra.mxu0 %v547
    %705 = vmatpush.bf16.msra.mxu0 %v546
    %706 = vmatpush.bf16.msra.mxu0 %v545
    %707 = vmatpush.bf16.msra.mxu0 %v544
    %708 = vmatpush.bf16.msra.mxu0 %v543
    %709 = vmatmul.bf16.gmra.mxu0 %v229
    %v710 = vpop.f32.mrf.mxu0
    %v711 = vadd.f32 %v698, %v710
    %v712 = vpop.f32.mrf.mxu0
    %713 = vdwg.mxu0
    %714 = vmatpush.bf16.msra.mxu0 %v558
    %715 = vmatpush.bf16.msra.mxu0 %v557
    %716 = vmatpush.bf16.msra.mxu0 %v556
    %717 = vmatpush.bf16.msra.mxu0 %v555
    %718 = vmatpush.bf16.msra.mxu0 %v554
    %719 = vmatpush.bf16.msra.mxu0 %v553
    %720 = vmatpush.bf16.msra.mxu0 %v552
    %721 = vmatpush.bf16.msra.mxu0 %v551
    %722 = vmatmul.bf16.gmra.mxu0 %v230
    %v723 = vpop.f32.mrf.mxu0
    %v724 = vadd.f32 %v711, %v723
    %v725 = vpop.f32.mrf.mxu0
    %726 = vdwg.mxu0
    %v727 = vpack.c.bf16 %v724, %v724
    %v728 = vld [vmem:[#allocation7] sm:$0xf]
    %v729 = vld [vmem:[#allocation7 + $0x4] sm:$0xf]
    %v730 = vld [vmem:[#allocation7 + $0x8] sm:$0xf]
    %v731 = vld [vmem:[#allocation7 + $0xc] sm:$0xf]
    %v732 = vld [vmem:[#allocation7 + $0x10] sm:$0xf]
    %v733 = vld [vmem:[#allocation7 + $0x14] sm:$0xf]
    %v734 = vld [vmem:[#allocation7 + $0x18] sm:$0xf]
    %v735 = vld [vmem:[#allocation7 + $0x1c] sm:$0xf]
    %v736 = vld [vmem:[#allocation7 + $0x20] sm:$0xf]
    %v737 = vld [vmem:[#allocation7 + $0x24] sm:$0xf]
    %v738 = vld [vmem:[#allocation7 + $0x28] sm:$0xf]
    %v739 = vld [vmem:[#allocation7 + $0x2c] sm:$0xf]
    %v740 = vld [vmem:[#allocation7 + $0x30] sm:$0xf]
    %v741 = vld [vmem:[#allocation7 + $0x34] sm:$0xf]
    %v742 = vld [vmem:[#allocation7 + $0x38] sm:$0xf]
    %v743 = vld [vmem:[#allocation7 + $0x3c] sm:$0xf]
    %v744 = vld [vmem:[%s4] sm:$0x1]
    %v746 = vperm.slane %v744, 0
    %v764 = vunpack.c.l.b16 %v728
    %v765 = vunpack.c.l.b16 %v729
    %v766 = vunpack.c.l.b16 %v730
    %v767 = vunpack.c.l.b16 %v731
    %v768 = vunpack.c.l.b16 %v732
    %v769 = vunpack.c.l.b16 %v733
    %v770 = vunpack.c.l.b16 %v734
    %v771 = vunpack.c.l.b16 %v735
    %v772 = vunpack.c.l.b16 %v736
    %v773 = vunpack.c.l.b16 %v737
    %v774 = vunpack.c.l.b16 %v738
    %v775 = vunpack.c.l.b16 %v739
    %v776 = vunpack.c.l.b16 %v740
    %v777 = vunpack.c.l.b16 %v741
    %v778 = vunpack.c.l.b16 %v742
    %v779 = vunpack.c.l.b16 %v743
    %v780 = vpack.c.b16 %v765, %v764
    %v781 = vpack.c.b16 %v767, %v766
    %v782 = vpack.c.b16 %v769, %v768
    %v783 = vpack.c.b16 %v771, %v770
    %v784 = vpack.c.b16 %v773, %v772
    %v785 = vpack.c.b16 %v775, %v774
    %v786 = vpack.c.b16 %v777, %v776
    %v787 = vpack.c.b16 %v779, %v778
    %796 = vmatpush.bf16.msra.mxu0 %v787
    %797 = vmatpush.bf16.msra.mxu0 %v786
    %798 = vmatpush.bf16.msra.mxu0 %v785
    %799 = vmatpush.bf16.msra.mxu0 %v784
    %800 = vmatpush.bf16.msra.mxu0 %v783
    %801 = vmatpush.bf16.msra.mxu0 %v782
    %802 = vmatpush.bf16.msra.mxu0 %v781
    %803 = vmatpush.bf16.msra.mxu0 %v780
    %804 = vmatmul.bf16.gmra.mxu0 %v727
    %v805 = vpop.f32.mrf.mxu0
    %v806 = vadd.f32 %v746, %v805
    %v807 = vpop.f32.mrf.mxu0
    %808 = vdwg.mxu0
    %v809 = vpack.c.bf16 %v806, %v806
    %v810 = vld [vmem:[#allocation8] sm:$0xf]
    %v811 = vld [vmem:[#allocation8 + $0x4] sm:$0xf]
    %v812 = vld [vmem:[#allocation8 + $0x8] sm:$0xf]
    %v813 = vld [vmem:[#allocation8 + $0xc] sm:$0xf]
    %v814 = vld [vmem:[#allocation8 + $0x10] sm:$0xf]
    %v815 = vld [vmem:[#allocation8 + $0x14] sm:$0xf]
    %v816 = vld [vmem:[#allocation8 + $0x18] sm:$0xf]
    %v817 = vld [vmem:[#allocation8 + $0x1c] sm:$0xf]
    %v818 = vld [vmem:[#allocation8 + $0x20] sm:$0xf]
    %v819 = vld [vmem:[#allocation8 + $0x24] sm:$0xf]
    %v820 = vld [vmem:[#allocation8 + $0x28] sm:$0xf]
    %v821 = vld [vmem:[#allocation8 + $0x2c] sm:$0xf]
    %v822 = vld [vmem:[#allocation8 + $0x30] sm:$0xf]
    %v823 = vld [vmem:[#allocation8 + $0x34] sm:$0xf]
    %v824 = vld [vmem:[#allocation8 + $0x38] sm:$0xf]
    %v825 = vld [vmem:[#allocation8 + $0x3c] sm:$0xf]
    %v826 = vld [vmem:[%s6] sm:$0x1]
    %v828 = vperm.slane %v826, 0
    %v846 = vunpack.c.l.b16 %v810
    %v847 = vunpack.c.l.b16 %v811
    %v848 = vunpack.c.l.b16 %v812
    %v849 = vunpack.c.l.b16 %v813
    %v850 = vunpack.c.l.b16 %v814
    %v851 = vunpack.c.l.b16 %v815
    %v852 = vunpack.c.l.b16 %v816
    %v853 = vunpack.c.l.b16 %v817
    %v854 = vunpack.c.l.b16 %v818
    %v855 = vunpack.c.l.b16 %v819
    %v856 = vunpack.c.l.b16 %v820
    %v857 = vunpack.c.l.b16 %v821
    %v858 = vunpack.c.l.b16 %v822
    %v859 = vunpack.c.l.b16 %v823
    %v860 = vunpack.c.l.b16 %v824
    %v861 = vunpack.c.l.b16 %v825
    %v862 = vpack.c.b16 %v847, %v846
    %v863 = vpack.c.b16 %v849, %v848
    %v864 = vpack.c.b16 %v851, %v850
    %v865 = vpack.c.b16 %v853, %v852
    %v866 = vpack.c.b16 %v855, %v854
    %v867 = vpack.c.b16 %v857, %v856
    %v868 = vpack.c.b16 %v859, %v858
    %v869 = vpack.c.b16 %v861, %v860
    %878 = vmatpush.bf16.msra.mxu0 %v869
    %879 = vmatpush.bf16.msra.mxu0 %v868
    %880 = vmatpush.bf16.msra.mxu0 %v867
    %881 = vmatpush.bf16.msra.mxu0 %v866
    %882 = vmatpush.bf16.msra.mxu0 %v865
    %883 = vmatpush.bf16.msra.mxu0 %v864
    %884 = vmatpush.bf16.msra.mxu0 %v863
    %885 = vmatpush.bf16.msra.mxu0 %v862
    %886 = vmatmul.bf16.gmra.mxu0 %v809
    %v887 = vpop.f32.mrf.mxu0
    %v888 = vadd.f32 %v828, %v887
    %v889 = vpop.f32.mrf.mxu0
    %890 = vdwg.mxu0
    %891 = vst [vmem:[#allocation10] sm:$0x3] %v888
    // Predicated region
    $region46: #{tpu_custom_call.1} parent=1 // pred_check
      _
    $region47: #{tpu_custom_call.1} parent=1 // pred_check_branch
      %893 = sbr.rel (0) target = $region49
    $region48: #{tpu_custom_call.1} parent=1 // pred_region
      %895 = vsyncadd [#allocation4], 0
      %s897 = sshll.u32 [#allocation10], 4
      %s898 = int_to_ptr.vmem [resolvable:$true] %s897
      %s899 = sshll.u32 %s7, 4
      %s900 = int_to_ptr.hbm [resolvable:$true] %s899
      %902 = dma.vmem_to_hbm [thread:$0]  %s898, 32, %s900, [#allocation4]
    $region49: #{tpu_custom_call.1} parent=1 // pred_fallthru
      _
    // Predicated region
    $region50: #{tpu_custom_call.1} parent=1 // pred_check
      _
    $region51: #{tpu_custom_call.1} parent=1 // pred_check_branch
      %904 = sbr.rel (0) target = $region53
    $region52: #{tpu_custom_call.1} parent=1 // pred_region
      %906 = dma.done [#allocation4], 32
    $region53: #{tpu_custom_call.1} parent=1 // pred_fallthru
      _
    %907 = vsyncpa [#allocation3], 1
    %908 = vsyncpa [#allocation6], 1
    %909 = vsyncpa [#allocation9], 1
    %910 = vsyncpa [#allocation4], 1

</llo_original>
